<compile_context>
chip_gen: v7x
topology: tpu7x:2x2x1
jax: 0.10.0
libtpu: 0.0.40
codegen_flags: <defaults>
</compile_context>

<pallas_src>
import functools

import jax
import jax.numpy as jnp
from jax import lax
from jax.experimental import pallas as pl
from jax.experimental.pallas import tpu as pltpu


def _lstm_kernel(x_ref, wih_t_ref, whh_t_ref, b_ref, wout_t_ref, bout_ref,
                 out_ref, xp_scr, h_scr, c_scr, *, seq_len, unroll):
    """One S-chunk of the LSTM recurrence per grid step.

    x_ref:       (S_CHUNK*B_pad, E)  bf16  time-major chunk of embedded tokens
    wih_t_ref:   (E, 4H)             bf16  W_ih^T, gates reordered to (i,f,o,g)
    whh_t_ref:   (H, 4H)             bf16  W_hh^T, gates reordered
    b_ref:       (1, 4H)             f32   b_ih + b_hh, gates reordered
    wout_t_ref:  (H, OUT_pad)        bf16  W_out^T, zero-padded lane-dense
    bout_ref:    (1, OUT_pad)        f32
    out_ref:     (B_pad, OUT_pad)    f32   same block across grid (resident)
    xp_scr:      (S_CHUNK*B_pad, 4H) f32   hoisted per-chunk input projection
    h_scr/c_scr: (B_pad, H)          f32   persistent LSTM state across chunks
    """
    chunk = pl.program_id(0)
    n_chunks = pl.num_programs(0)
    B_pad, H = h_scr.shape
    s_chunk = xp_scr.shape[0] // B_pad

    @pl.when(chunk == 0)
    def _init():
        h_scr[...] = jnp.zeros_like(h_scr)
        c_scr[...] = jnp.zeros_like(c_scr)

    # Hoisted input projection for the whole chunk: ONE bf16 MXU matmul with
    # the bias folded in, stored once to a flat 2-D scratch (no reshape).
    xp_scr[...] = (jnp.dot(x_ref[...], wih_t_ref[...],
                           preferred_element_type=jnp.float32)
                   + b_ref[...])

    whh_t = whh_t_ref[...]                       # (H, 4H) bf16, loaded once

    def step(t, carry):
        h, c = carry                             # (B_pad, H) f32, in vregs
        row0 = pl.multiple_of(t * B_pad, B_pad)  # aligned full-vreg load
        gates = (xp_scr[pl.ds(row0, B_pad), :]
                 + jnp.dot(h.astype(jnp.bfloat16), whh_t,
                           preferred_element_type=jnp.float32))
        # Gates pre-permuted to (i, f, o, g): one sigmoid slab + one tanh slab.
        sig = jax.nn.sigmoid(gates[:, 0:3 * H])
        g_g = jnp.tanh(gates[:, 3 * H:4 * H])
        i_g = sig[:, 0:H]
        f_g = sig[:, H:2 * H]
        o_g = sig[:, 2 * H:3 * H]
        c_new = f_g * c + i_g * g_g
        h_new = o_g * jnp.tanh(c_new)
        # Padded time steps (global index >= seq_len) leave the state intact.
        valid = (chunk * s_chunk + t) < seq_len
        return jnp.where(valid, h_new, h), jnp.where(valid, c_new, c)

    h_last, c_last = lax.fori_loop(0, s_chunk, step,
                                   (h_scr[...], c_scr[...]),
                                   unroll=unroll)
    h_scr[...] = h_last
    c_scr[...] = c_last

    @pl.when(chunk == n_chunks - 1)
    def _finalize():
        # Final Linear on the last hidden state, written lane-dense.
        out_ref[...] = (jnp.dot(h_last.astype(jnp.bfloat16), wout_t_ref[...],
                                preferred_element_type=jnp.float32)
                        + bout_ref[...])


def _reorder_gates(a, H, axis=0):
    """PyTorch LSTM packs gates as (i, f, g, o); reorder to (i, f, o, g)."""
    i_f = lax.slice_in_dim(a, 0, 2 * H, axis=axis)
    g = lax.slice_in_dim(a, 2 * H, 3 * H, axis=axis)
    o = lax.slice_in_dim(a, 3 * H, 4 * H, axis=axis)
    return jnp.concatenate([i_f, o, g], axis=axis)


def sentiment_lstm_forward(tokens, params, *, s_chunk=128, unroll=8):
    """tokens: (B, S) int32. Returns (B, OUT) float32 sentiment logits."""
    emb_table = params["embedding"]                  # (V, E)
    w_ih, w_hh = params["w_ih"], params["w_hh"]      # (4H, E), (4H, H)
    b = params["b_ih"] + params["b_hh"]              # (4H,)
    w_out, b_out = params["w_out"], params["b_out"]  # (OUT, H), (OUT,)

    B, S = tokens.shape
    E = emb_table.shape[1]
    H = w_hh.shape[1]
    OUT = w_out.shape[0]

    # TODO(synk): for throughput, pack 64-256 real sequences per call and (on
    # v7x) shard the batch across both TensorCores; at toy shapes we just pad
    # to one sublane tile.
    B_pad = ((max(B, 8) + 7) // 8) * 8
    OUT_pad = ((max(OUT, 128) + 127) // 128) * 128

    s_chunk = max(1, min(s_chunk, S))
    n_chunks = pl.cdiv(S, s_chunk)
    S_pad = n_chunks * s_chunk
    unroll = max(1, min(unroll, s_chunk))

    # Embedding gather stays in plain JAX glue.
    # TODO(synk): fuse the gather into the Pallas pipeline (scalar-prefetch
    # tokens + pl.Element row gather) to drop the extra HBM pass at scale.
    embeds = jnp.take(emb_table, tokens, axis=0)                  # (B, S, E)
    x_sbe = jnp.transpose(embeds, (1, 0, 2))                      # (S, B, E)
    x_pad = jnp.zeros((S_pad, B_pad, E), jnp.bfloat16)
    x_pad = x_pad.at[:S, :B, :].set(x_sbe.astype(jnp.bfloat16))
    x_2d = x_pad.reshape(S_pad * B_pad, E)

    # Pre-transpose / pad / gate-reorder weights once in the wrapper.
    # MXU operands are bf16; biases stay f32 (added to the f32 matmul result).
    wih_t = _reorder_gates(w_ih, H).T.astype(jnp.bfloat16)        # (E, 4H)
    whh_t = _reorder_gates(w_hh, H).T.astype(jnp.bfloat16)        # (H, 4H)
    bias = _reorder_gates(b, H).reshape(1, 4 * H).astype(jnp.float32)
    wout_t = jnp.zeros((H, OUT_pad), jnp.bfloat16).at[:, :OUT].set(
        w_out.T.astype(jnp.bfloat16))
    bout = jnp.zeros((1, OUT_pad), jnp.float32).at[:, :OUT].set(
        b_out.reshape(1, OUT).astype(jnp.float32))

    # VMEM budget: double-buffered inputs + scratch + output, plus headroom.
    in_bytes = (s_chunk * B_pad * E * 2      # x chunk (bf16)
                + E * 4 * H * 2              # wih_t
                + H * 4 * H * 2              # whh_t
                + 4 * H * 4                  # bias
                + H * OUT_pad * 2            # wout_t
                + OUT_pad * 4)               # bout
    scratch_bytes = s_chunk * B_pad * 4 * H * 4 + 2 * B_pad * H * 4
    out_bytes = B_pad * OUT_pad * 4
    vmem_limit = int(min(128 * 1024 * 1024,
                         2 * in_bytes + scratch_bytes + 2 * out_bytes
                         + (8 << 20)))

    kernel = functools.partial(_lstm_kernel, seq_len=S, unroll=unroll)

    out_pad = pl.pallas_call(
        kernel,
        out_shape=jax.ShapeDtypeStruct((B_pad, OUT_pad), jnp.float32),
        grid_spec=pltpu.PrefetchScalarGridSpec(
            num_scalar_prefetch=0,
            grid=(n_chunks,),
            in_specs=[
                pl.BlockSpec((s_chunk * B_pad, E), lambda s: (s, 0)),
                pl.BlockSpec((E, 4 * H), lambda s: (0, 0)),
                pl.BlockSpec((H, 4 * H), lambda s: (0, 0)),
                pl.BlockSpec((1, 4 * H), lambda s: (0, 0)),
                pl.BlockSpec((H, OUT_pad), lambda s: (0, 0)),
                pl.BlockSpec((1, OUT_pad), lambda s: (0, 0)),
            ],
            out_specs=pl.BlockSpec((B_pad, OUT_pad), lambda s: (0, 0)),
            scratch_shapes=[
                pltpu.VMEM((s_chunk * B_pad, 4 * H), jnp.float32),  # xp
                pltpu.VMEM((B_pad, H), jnp.float32),                # h
                pltpu.VMEM((B_pad, H), jnp.float32),                # c
            ]),
        compiler_params=pltpu.CompilerParams(
            dimension_semantics=("arbitrary",),
            vmem_limit_bytes=vmem_limit),
    )(x_2d, wih_t, whh_t, bias, wout_t, bout)
    return out_pad[:B, :OUT]


def reference_forward(tokens, params):
    """Pure-JAX f32 reference for correctness checking."""
    emb = jnp.take(params["embedding"], tokens, axis=0)  # (B, S, E)
    H = params["w_hh"].shape[1]
    w_ih, w_hh = params["w_ih"], params["w_hh"]
    b = params["b_ih"] + params["b_hh"]
    B, S, _ = emb.shape
    h = jnp.zeros((B, H), jnp.float32)
    c = jnp.zeros((B, H), jnp.float32)
    for t in range(S):
        gates = emb[:, t, :] @ w_ih.T + h @ w_hh.T + b
        i = jax.nn.sigmoid(gates[:, 0 * H:1 * H])
        f = jax.nn.sigmoid(gates[:, 1 * H:2 * H])
        g = jnp.tanh(gates[:, 2 * H:3 * H])
        o = jax.nn.sigmoid(gates[:, 3 * H:4 * H])
        c = f * c + i * g
        h = o * jnp.tanh(c)
    return h @ params["w_out"].T + params["b_out"]


def init_params(key, vocab, embedding_dim, hidden_dim, output_size):
    ks = jax.random.split(key, 7)
    H = hidden_dim
    k = 1.0 / jnp.sqrt(H)
    return {
        "embedding": jax.random.normal(ks[0], (vocab, embedding_dim), jnp.float32),
        "w_ih": jax.random.uniform(ks[1], (4 * H, embedding_dim), jnp.float32, -k, k),
        "w_hh": jax.random.uniform(ks[2], (4 * H, H), jnp.float32, -k, k),
        "b_ih": jax.random.uniform(ks[3], (4 * H,), jnp.float32, -k, k),
        "b_hh": jax.random.uniform(ks[4], (4 * H,), jnp.float32, -k, k),
        "w_out": jax.random.uniform(ks[5], (output_size, H), jnp.float32, -k, k),
        "b_out": jax.random.uniform(ks[6], (output_size,), jnp.float32, -k, k),
    }


if __name__ == "__main__":
    # Small shapes: vocab=100, batch=2, seq=8, embedding_dim=32, hidden=32, output=4
    VOCAB, B, S, E, H, OUT = 100, 2, 8, 32, 32, 4

    key = jax.random.PRNGKey(0)
    k_par, k_tok = jax.random.split(key)
    params = init_params(k_par, VOCAB, E, H, OUT)
    tokens = jax.random.randint(k_tok, (B, S), 0, VOCAB, dtype=jnp.int32)

    ref = reference_forward(tokens, params)

    # Single-chunk path (s_chunk >= S).
    out = jax.block_until_ready(sentiment_lstm_forward(tokens, params))
    assert out.shape == (B, OUT)
    # bf16 MXU operands -> looser tolerance than the all-f32 variant.
    assert jnp.allclose(out, ref, atol=2e-2, rtol=2e-2), (out, ref)

    # Multi-chunk path exercising the S grid + padded-timestep masking.
    out2 = jax.block_until_ready(
        sentiment_lstm_forward(tokens, params, s_chunk=3, unroll=2))
    assert jnp.allclose(out2, ref, atol=2e-2, rtol=2e-2), (out2, ref)

    print("KERNEL_OK")
</pallas_src>

<mosaic_0001>
module attributes {stable_mosaic.version = 11 : i64} {
  func.func @_lstm_kernel(%arg0: i32, %arg1: memref<64x32xbf16, #tpu.memory_space<vmem>>, %arg2: memref<32x128xbf16, #tpu.memory_space<vmem>>, %arg3: memref<32x128xbf16, #tpu.memory_space<vmem>>, %arg4: memref<1x128xf32, #tpu.memory_space<vmem>>, %arg5: memref<32x128xbf16, #tpu.memory_space<vmem>>, %arg6: memref<1x128xf32, #tpu.memory_space<vmem>>, %arg7: memref<8x128xf32, #tpu.memory_space<vmem>>, %arg8: memref<64x128xf32, #tpu.memory_space<vmem>>, %arg9: memref<8x32xf32, #tpu.memory_space<vmem>>, %arg10: memref<8x32xf32, #tpu.memory_space<vmem>>) attributes {dimension_semantics = [#tpu.dimension_semantics<arbitrary>], iteration_bounds = array<i64: 1>, scalar_prefetch = 0 : i64, scratch_operands = 3 : i64, tpu.core_type = #tpu.core_type<tc>, window_params = [{transform_indices = @transform_0, window_bounds = array<i64: 64, 32>}, {pipeline_mode = #tpu.pipeline_mode<synchronous>, transform_indices = @transform_1, window_bounds = array<i64: 32, 128>}, {pipeline_mode = #tpu.pipeline_mode<synchronous>, transform_indices = @transform_2, window_bounds = array<i64: 32, 128>}, {pipeline_mode = #tpu.pipeline_mode<synchronous>, transform_indices = @transform_3, window_bounds = array<i64: 1, 128>}, {pipeline_mode = #tpu.pipeline_mode<synchronous>, transform_indices = @transform_4, window_bounds = array<i64: 32, 128>}, {pipeline_mode = #tpu.pipeline_mode<synchronous>, transform_indices = @transform_5, window_bounds = array<i64: 1, 128>}, {pipeline_mode = #tpu.pipeline_mode<synchronous>, transform_indices = @transform_6, window_bounds = array<i64: 8, 128>}]} {
    %c0_i32 = arith.constant 0 : i32
    %0 = arith.cmpi eq, %arg0, %c0_i32 : i32
    %1 = arith.extui %0 : i1 to i32
    %c0_i32_0 = arith.constant 0 : i32
    %2 = arith.cmpi ne, %1, %c0_i32_0 : i32
    scf.if %2 {
      %cst_69 = arith.constant 0.000000e+00 : f32
      %242 = vector.broadcast %cst_69 : f32 to vector<8x32xf32>
      %c0_70 = arith.constant 0 : index
      %c0_71 = arith.constant 0 : index
      %243 = vector.load %arg9[%c0_70, %c0_71] : memref<8x32xf32, #tpu.memory_space<vmem>>, vector<8x32xf32>
      tpu.vector_store %arg9[%c0_70, %c0_71], %242 {strides = array<i32>} : memref<8x32xf32, #tpu.memory_space<vmem>>, vector<8x32xf32>,
      %cst_72 = arith.constant 0.000000e+00 : f32
      %244 = vector.broadcast %cst_72 : f32 to vector<8x32xf32>
      %c0_73 = arith.constant 0 : index
      %c0_74 = arith.constant 0 : index
      %245 = vector.load %arg10[%c0_73, %c0_74] : memref<8x32xf32, #tpu.memory_space<vmem>>, vector<8x32xf32>
      tpu.vector_store %arg10[%c0_73, %c0_74], %244 {strides = array<i32>} : memref<8x32xf32, #tpu.memory_space<vmem>>, vector<8x32xf32>,
    } else {
    }
    %c0 = arith.constant 0 : index
    %c0_1 = arith.constant 0 : index
    %3 = vector.load %arg1[%c0, %c0_1] : memref<64x32xbf16, #tpu.memory_space<vmem>>, vector<64x32xbf16>
    %c0_2 = arith.constant 0 : index
    %c0_3 = arith.constant 0 : index
    %4 = vector.load %arg2[%c0_2, %c0_3] : memref<32x128xbf16, #tpu.memory_space<vmem>>, vector<32x128xbf16>
    %cst = arith.constant dense<0.000000e+00> : vector<64x128xf32>
    %5 = tpu.matmul %3, %4, %cst {dimension_numbers = #tpu.dot_dimension_numbers<[1], [0], [0], [1], [0, 0, 1, 1], [], []>} : vector<64x32xbf16>, vector<32x128xbf16>, vector<64x128xf32> -> vector<64x128xf32>
    %c0_4 = arith.constant 0 : index
    %c0_5 = arith.constant 0 : index
    %6 = vector.load %arg4[%c0_4, %c0_5] : memref<1x128xf32, #tpu.memory_space<vmem>>, vector<1x128xf32>
    %7 = vector.broadcast %6 : vector<1x128xf32> to vector<64x128xf32>
    %8 = arith.addf %5, %7 : vector<64x128xf32>
    %c0_6 = arith.constant 0 : index
    %c0_7 = arith.constant 0 : index
    %9 = vector.load %arg8[%c0_6, %c0_7] : memref<64x128xf32, #tpu.memory_space<vmem>>, vector<64x128xf32>
    tpu.vector_store %arg8[%c0_6, %c0_7], %8 {strides = array<i32>} : memref<64x128xf32, #tpu.memory_space<vmem>>, vector<64x128xf32>,
    %c0_8 = arith.constant 0 : index
    %c0_9 = arith.constant 0 : index
    %10 = vector.load %arg3[%c0_8, %c0_9] : memref<32x128xbf16, #tpu.memory_space<vmem>>, vector<32x128xbf16>
    %c0_10 = arith.constant 0 : index
    %c0_11 = arith.constant 0 : index
    %11 = vector.load %arg9[%c0_10, %c0_11] : memref<8x32xf32, #tpu.memory_space<vmem>>, vector<8x32xf32>
    %c0_12 = arith.constant 0 : index
    %c0_13 = arith.constant 0 : index
    %12 = vector.load %arg10[%c0_12, %c0_13] : memref<8x32xf32, #tpu.memory_space<vmem>>, vector<8x32xf32>
    %c0_i32_14 = arith.constant 0 : i32
    %c8_i32 = arith.constant 8 : i32
    %13 = arith.muli %c0_i32_14, %c8_i32 : i32
    %14 = tpu.assume_multiple %13, 8 : i32
    %15 = arith.index_cast %14 : i32 to index
    %c0_15 = arith.constant 0 : index
    %16 = vector.load %arg8[%15, %c0_15] : memref<64x128xf32, #tpu.memory_space<vmem>>, vector<8x128xf32>
    %17 = arith.truncf %11 : vector<8x32xf32> to vector<8x32xbf16>
    %cst_16 = arith.constant dense<0.000000e+00> : vector<8x128xf32>
    %18 = tpu.matmul %17, %10, %cst_16 {dimension_numbers = #tpu.dot_dimension_numbers<[1], [0], [0], [1], [0, 0, 1, 1], [], []>} : vector<8x32xbf16>, vector<32x128xbf16>, vector<8x128xf32> -> vector<8x128xf32>
    %19 = arith.addf %16, %18 : vector<8x128xf32>
    %20 = vector.extract_strided_slice %19 {offsets = [0, 0], sizes = [8, 96], strides = [1, 1]} : vector<8x128xf32> to vector<8x96xf32>
    %21 = arith.negf %20 : vector<8x96xf32>
    %22 = math.exp %21 : vector<8x96xf32>
    %cst_17 = arith.constant 1.000000e+00 : f32
    %23 = vector.broadcast %cst_17 : f32 to vector<8x96xf32>
    %24 = arith.addf %23, %22 : vector<8x96xf32>
    %25 = arith.divf %23, %24 : vector<8x96xf32>
    %26 = vector.extract_strided_slice %19 {offsets = [0, 96], sizes = [8, 32], strides = [1, 1]} : vector<8x128xf32> to vector<8x32xf32>
    %27 = math.tanh %26 : vector<8x32xf32>
    %28 = vector.extract_strided_slice %25 {offsets = [0, 0], sizes = [8, 32], strides = [1, 1]} : vector<8x96xf32> to vector<8x32xf32>
    %29 = vector.extract_strided_slice %25 {offsets = [0, 32], sizes = [8, 32], strides = [1, 1]} : vector<8x96xf32> to vector<8x32xf32>
    %30 = vector.extract_strided_slice %25 {offsets = [0, 64], sizes = [8, 32], strides = [1, 1]} : vector<8x96xf32> to vector<8x32xf32>
    %31 = arith.mulf %29, %12 : vector<8x32xf32>
    %32 = arith.mulf %28, %27 : vector<8x32xf32>
    %33 = arith.addf %31, %32 : vector<8x32xf32>
    %34 = math.tanh %33 : vector<8x32xf32>
    %35 = arith.mulf %30, %34 : vector<8x32xf32>
    %c8_i32_18 = arith.constant 8 : i32
    %36 = arith.muli %arg0, %c8_i32_18 : i32
    %37 = arith.addi %36, %c0_i32_14 : i32
    %c8_i32_19 = arith.constant 8 : i32
    %38 = arith.cmpi slt, %37, %c8_i32_19 : i32
    %39 = arith.select %38, %35, %11 : vector<8x32xf32>
    %40 = arith.select %38, %33, %12 : vector<8x32xf32>
    %c1_i32 = arith.constant 1 : i32
    %c8_i32_20 = arith.constant 8 : i32
    %41 = arith.muli %c1_i32, %c8_i32_20 : i32
    %42 = tpu.assume_multiple %41, 8 : i32
    %43 = arith.index_cast %42 : i32 to index
    %c0_21 = arith.constant 0 : index
    %44 = vector.load %arg8[%43, %c0_21] : memref<64x128xf32, #tpu.memory_space<vmem>>, vector<8x128xf32>
    %45 = arith.truncf %39 : vector<8x32xf32> to vector<8x32xbf16>
    %cst_22 = arith.constant dense<0.000000e+00> : vector<8x128xf32>
    %46 = tpu.matmul %45, %10, %cst_22 {dimension_numbers = #tpu.dot_dimension_numbers<[1], [0], [0], [1], [0, 0, 1, 1], [], []>} : vector<8x32xbf16>, vector<32x128xbf16>, vector<8x128xf32> -> vector<8x128xf32>
    %47 = arith.addf %44, %46 : vector<8x128xf32>
    %48 = vector.extract_strided_slice %47 {offsets = [0, 0], sizes = [8, 96], strides = [1, 1]} : vector<8x128xf32> to vector<8x96xf32>
    %49 = arith.negf %48 : vector<8x96xf32>
    %50 = math.exp %49 : vector<8x96xf32>
    %cst_23 = arith.constant 1.000000e+00 : f32
    %51 = vector.broadcast %cst_23 : f32 to vector<8x96xf32>
    %52 = arith.addf %51, %50 : vector<8x96xf32>
    %53 = arith.divf %51, %52 : vector<8x96xf32>
    %54 = vector.extract_strided_slice %47 {offsets = [0, 96], sizes = [8, 32], strides = [1, 1]} : vector<8x128xf32> to vector<8x32xf32>
    %55 = math.tanh %54 : vector<8x32xf32>
    %56 = vector.extract_strided_slice %53 {offsets = [0, 0], sizes = [8, 32], strides = [1, 1]} : vector<8x96xf32> to vector<8x32xf32>
    %57 = vector.extract_strided_slice %53 {offsets = [0, 32], sizes = [8, 32], strides = [1, 1]} : vector<8x96xf32> to vector<8x32xf32>
    %58 = vector.extract_strided_slice %53 {offsets = [0, 64], sizes = [8, 32], strides = [1, 1]} : vector<8x96xf32> to vector<8x32xf32>
    %59 = arith.mulf %57, %40 : vector<8x32xf32>
    %60 = arith.mulf %56, %55 : vector<8x32xf32>
    %61 = arith.addf %59, %60 : vector<8x32xf32>
    %62 = math.tanh %61 : vector<8x32xf32>
    %63 = arith.mulf %58, %62 : vector<8x32xf32>
    %c8_i32_24 = arith.constant 8 : i32
    %64 = arith.muli %arg0, %c8_i32_24 : i32
    %65 = arith.addi %64, %c1_i32 : i32
    %c8_i32_25 = arith.constant 8 : i32
    %66 = arith.cmpi slt, %65, %c8_i32_25 : i32
    %67 = arith.select %66, %63, %39 : vector<8x32xf32>
    %68 = arith.select %66, %61, %40 : vector<8x32xf32>
    %c2_i32 = arith.constant 2 : i32
    %c8_i32_26 = arith.constant 8 : i32
    %69 = arith.muli %c2_i32, %c8_i32_26 : i32
    %70 = tpu.assume_multiple %69, 8 : i32
    %71 = arith.index_cast %70 : i32 to index
    %c0_27 = arith.constant 0 : index
    %72 = vector.load %arg8[%71, %c0_27] : memref<64x128xf32, #tpu.memory_space<vmem>>, vector<8x128xf32>
    %73 = arith.truncf %67 : vector<8x32xf32> to vector<8x32xbf16>
    %cst_28 = arith.constant dense<0.000000e+00> : vector<8x128xf32>
    %74 = tpu.matmul %73, %10, %cst_28 {dimension_numbers = #tpu.dot_dimension_numbers<[1], [0], [0], [1], [0, 0, 1, 1], [], []>} : vector<8x32xbf16>, vector<32x128xbf16>, vector<8x128xf32> -> vector<8x128xf32>
    %75 = arith.addf %72, %74 : vector<8x128xf32>
    %76 = vector.extract_strided_slice %75 {offsets = [0, 0], sizes = [8, 96], strides = [1, 1]} : vector<8x128xf32> to vector<8x96xf32>
    %77 = arith.negf %76 : vector<8x96xf32>
    %78 = math.exp %77 : vector<8x96xf32>
    %cst_29 = arith.constant 1.000000e+00 : f32
    %79 = vector.broadcast %cst_29 : f32 to vector<8x96xf32>
    %80 = arith.addf %79, %78 : vector<8x96xf32>
    %81 = arith.divf %79, %80 : vector<8x96xf32>
    %82 = vector.extract_strided_slice %75 {offsets = [0, 96], sizes = [8, 32], strides = [1, 1]} : vector<8x128xf32> to vector<8x32xf32>
    %83 = math.tanh %82 : vector<8x32xf32>
    %84 = vector.extract_strided_slice %81 {offsets = [0, 0], sizes = [8, 32], strides = [1, 1]} : vector<8x96xf32> to vector<8x32xf32>
    %85 = vector.extract_strided_slice %81 {offsets = [0, 32], sizes = [8, 32], strides = [1, 1]} : vector<8x96xf32> to vector<8x32xf32>
    %86 = vector.extract_strided_slice %81 {offsets = [0, 64], sizes = [8, 32], strides = [1, 1]} : vector<8x96xf32> to vector<8x32xf32>
    %87 = arith.mulf %85, %68 : vector<8x32xf32>
    %88 = arith.mulf %84, %83 : vector<8x32xf32>
    %89 = arith.addf %87, %88 : vector<8x32xf32>
    %90 = math.tanh %89 : vector<8x32xf32>
    %91 = arith.mulf %86, %90 : vector<8x32xf32>
    %c8_i32_30 = arith.constant 8 : i32
    %92 = arith.muli %arg0, %c8_i32_30 : i32
    %93 = arith.addi %92, %c2_i32 : i32
    %c8_i32_31 = arith.constant 8 : i32
    %94 = arith.cmpi slt, %93, %c8_i32_31 : i32
    %95 = arith.select %94, %91, %67 : vector<8x32xf32>
    %96 = arith.select %94, %89, %68 : vector<8x32xf32>
    %c3_i32 = arith.constant 3 : i32
    %c8_i32_32 = arith.constant 8 : i32
    %97 = arith.muli %c3_i32, %c8_i32_32 : i32
    %98 = tpu.assume_multiple %97, 8 : i32
    %99 = arith.index_cast %98 : i32 to index
    %c0_33 = arith.constant 0 : index
    %100 = vector.load %arg8[%99, %c0_33] : memref<64x128xf32, #tpu.memory_space<vmem>>, vector<8x128xf32>
    %101 = arith.truncf %95 : vector<8x32xf32> to vector<8x32xbf16>
    %cst_34 = arith.constant dense<0.000000e+00> : vector<8x128xf32>
    %102 = tpu.matmul %101, %10, %cst_34 {dimension_numbers = #tpu.dot_dimension_numbers<[1], [0], [0], [1], [0, 0, 1, 1], [], []>} : vector<8x32xbf16>, vector<32x128xbf16>, vector<8x128xf32> -> vector<8x128xf32>
    %103 = arith.addf %100, %102 : vector<8x128xf32>
    %104 = vector.extract_strided_slice %103 {offsets = [0, 0], sizes = [8, 96], strides = [1, 1]} : vector<8x128xf32> to vector<8x96xf32>
    %105 = arith.negf %104 : vector<8x96xf32>
    %106 = math.exp %105 : vector<8x96xf32>
    %cst_35 = arith.constant 1.000000e+00 : f32
    %107 = vector.broadcast %cst_35 : f32 to vector<8x96xf32>
    %108 = arith.addf %107, %106 : vector<8x96xf32>
    %109 = arith.divf %107, %108 : vector<8x96xf32>
    %110 = vector.extract_strided_slice %103 {offsets = [0, 96], sizes = [8, 32], strides = [1, 1]} : vector<8x128xf32> to vector<8x32xf32>
    %111 = math.tanh %110 : vector<8x32xf32>
    %112 = vector.extract_strided_slice %109 {offsets = [0, 0], sizes = [8, 32], strides = [1, 1]} : vector<8x96xf32> to vector<8x32xf32>
    %113 = vector.extract_strided_slice %109 {offsets = [0, 32], sizes = [8, 32], strides = [1, 1]} : vector<8x96xf32> to vector<8x32xf32>
    %114 = vector.extract_strided_slice %109 {offsets = [0, 64], sizes = [8, 32], strides = [1, 1]} : vector<8x96xf32> to vector<8x32xf32>
    %115 = arith.mulf %113, %96 : vector<8x32xf32>
    %116 = arith.mulf %112, %111 : vector<8x32xf32>
    %117 = arith.addf %115, %116 : vector<8x32xf32>
    %118 = math.tanh %117 : vector<8x32xf32>
    %119 = arith.mulf %114, %118 : vector<8x32xf32>
    %c8_i32_36 = arith.constant 8 : i32
    %120 = arith.muli %arg0, %c8_i32_36 : i32
    %121 = arith.addi %120, %c3_i32 : i32
    %c8_i32_37 = arith.constant 8 : i32
    %122 = arith.cmpi slt, %121, %c8_i32_37 : i32
    %123 = arith.select %122, %119, %95 : vector<8x32xf32>
    %124 = arith.select %122, %117, %96 : vector<8x32xf32>
    %c4_i32 = arith.constant 4 : i32
    %c8_i32_38 = arith.constant 8 : i32
    %125 = arith.muli %c4_i32, %c8_i32_38 : i32
    %126 = tpu.assume_multiple %125, 8 : i32
    %127 = arith.index_cast %126 : i32 to index
    %c0_39 = arith.constant 0 : index
    %128 = vector.load %arg8[%127, %c0_39] : memref<64x128xf32, #tpu.memory_space<vmem>>, vector<8x128xf32>
    %129 = arith.truncf %123 : vector<8x32xf32> to vector<8x32xbf16>
    %cst_40 = arith.constant dense<0.000000e+00> : vector<8x128xf32>
    %130 = tpu.matmul %129, %10, %cst_40 {dimension_numbers = #tpu.dot_dimension_numbers<[1], [0], [0], [1], [0, 0, 1, 1], [], []>} : vector<8x32xbf16>, vector<32x128xbf16>, vector<8x128xf32> -> vector<8x128xf32>
    %131 = arith.addf %128, %130 : vector<8x128xf32>
    %132 = vector.extract_strided_slice %131 {offsets = [0, 0], sizes = [8, 96], strides = [1, 1]} : vector<8x128xf32> to vector<8x96xf32>
    %133 = arith.negf %132 : vector<8x96xf32>
    %134 = math.exp %133 : vector<8x96xf32>
    %cst_41 = arith.constant 1.000000e+00 : f32
    %135 = vector.broadcast %cst_41 : f32 to vector<8x96xf32>
    %136 = arith.addf %135, %134 : vector<8x96xf32>
    %137 = arith.divf %135, %136 : vector<8x96xf32>
    %138 = vector.extract_strided_slice %131 {offsets = [0, 96], sizes = [8, 32], strides = [1, 1]} : vector<8x128xf32> to vector<8x32xf32>
    %139 = math.tanh %138 : vector<8x32xf32>
    %140 = vector.extract_strided_slice %137 {offsets = [0, 0], sizes = [8, 32], strides = [1, 1]} : vector<8x96xf32> to vector<8x32xf32>
    %141 = vector.extract_strided_slice %137 {offsets = [0, 32], sizes = [8, 32], strides = [1, 1]} : vector<8x96xf32> to vector<8x32xf32>
    %142 = vector.extract_strided_slice %137 {offsets = [0, 64], sizes = [8, 32], strides = [1, 1]} : vector<8x96xf32> to vector<8x32xf32>
    %143 = arith.mulf %141, %124 : vector<8x32xf32>
    %144 = arith.mulf %140, %139 : vector<8x32xf32>
    %145 = arith.addf %143, %144 : vector<8x32xf32>
    %146 = math.tanh %145 : vector<8x32xf32>
    %147 = arith.mulf %142, %146 : vector<8x32xf32>
    %c8_i32_42 = arith.constant 8 : i32
    %148 = arith.muli %arg0, %c8_i32_42 : i32
    %149 = arith.addi %148, %c4_i32 : i32
    %c8_i32_43 = arith.constant 8 : i32
    %150 = arith.cmpi slt, %149, %c8_i32_43 : i32
    %151 = arith.select %150, %147, %123 : vector<8x32xf32>
    %152 = arith.select %150, %145, %124 : vector<8x32xf32>
    %c5_i32 = arith.constant 5 : i32
    %c8_i32_44 = arith.constant 8 : i32
    %153 = arith.muli %c5_i32, %c8_i32_44 : i32
    %154 = tpu.assume_multiple %153, 8 : i32
    %155 = arith.index_cast %154 : i32 to index
    %c0_45 = arith.constant 0 : index
    %156 = vector.load %arg8[%155, %c0_45] : memref<64x128xf32, #tpu.memory_space<vmem>>, vector<8x128xf32>
    %157 = arith.truncf %151 : vector<8x32xf32> to vector<8x32xbf16>
    %cst_46 = arith.constant dense<0.000000e+00> : vector<8x128xf32>
    %158 = tpu.matmul %157, %10, %cst_46 {dimension_numbers = #tpu.dot_dimension_numbers<[1], [0], [0], [1], [0, 0, 1, 1], [], []>} : vector<8x32xbf16>, vector<32x128xbf16>, vector<8x128xf32> -> vector<8x128xf32>
    %159 = arith.addf %156, %158 : vector<8x128xf32>
    %160 = vector.extract_strided_slice %159 {offsets = [0, 0], sizes = [8, 96], strides = [1, 1]} : vector<8x128xf32> to vector<8x96xf32>
    %161 = arith.negf %160 : vector<8x96xf32>
    %162 = math.exp %161 : vector<8x96xf32>
    %cst_47 = arith.constant 1.000000e+00 : f32
    %163 = vector.broadcast %cst_47 : f32 to vector<8x96xf32>
    %164 = arith.addf %163, %162 : vector<8x96xf32>
    %165 = arith.divf %163, %164 : vector<8x96xf32>
    %166 = vector.extract_strided_slice %159 {offsets = [0, 96], sizes = [8, 32], strides = [1, 1]} : vector<8x128xf32> to vector<8x32xf32>
    %167 = math.tanh %166 : vector<8x32xf32>
    %168 = vector.extract_strided_slice %165 {offsets = [0, 0], sizes = [8, 32], strides = [1, 1]} : vector<8x96xf32> to vector<8x32xf32>
    %169 = vector.extract_strided_slice %165 {offsets = [0, 32], sizes = [8, 32], strides = [1, 1]} : vector<8x96xf32> to vector<8x32xf32>
    %170 = vector.extract_strided_slice %165 {offsets = [0, 64], sizes = [8, 32], strides = [1, 1]} : vector<8x96xf32> to vector<8x32xf32>
    %171 = arith.mulf %169, %152 : vector<8x32xf32>
    %172 = arith.mulf %168, %167 : vector<8x32xf32>
    %173 = arith.addf %171, %172 : vector<8x32xf32>
    %174 = math.tanh %173 : vector<8x32xf32>
    %175 = arith.mulf %170, %174 : vector<8x32xf32>
    %c8_i32_48 = arith.constant 8 : i32
    %176 = arith.muli %arg0, %c8_i32_48 : i32
    %177 = arith.addi %176, %c5_i32 : i32
    %c8_i32_49 = arith.constant 8 : i32
    %178 = arith.cmpi slt, %177, %c8_i32_49 : i32
    %179 = arith.select %178, %175, %151 : vector<8x32xf32>
    %180 = arith.select %178, %173, %152 : vector<8x32xf32>
    %c6_i32 = arith.constant 6 : i32
    %c8_i32_50 = arith.constant 8 : i32
    %181 = arith.muli %c6_i32, %c8_i32_50 : i32
    %182 = tpu.assume_multiple %181, 8 : i32
    %183 = arith.index_cast %182 : i32 to index
    %c0_51 = arith.constant 0 : index
    %184 = vector.load %arg8[%183, %c0_51] : memref<64x128xf32, #tpu.memory_space<vmem>>, vector<8x128xf32>
    %185 = arith.truncf %179 : vector<8x32xf32> to vector<8x32xbf16>
    %cst_52 = arith.constant dense<0.000000e+00> : vector<8x128xf32>
    %186 = tpu.matmul %185, %10, %cst_52 {dimension_numbers = #tpu.dot_dimension_numbers<[1], [0], [0], [1], [0, 0, 1, 1], [], []>} : vector<8x32xbf16>, vector<32x128xbf16>, vector<8x128xf32> -> vector<8x128xf32>
    %187 = arith.addf %184, %186 : vector<8x128xf32>
    %188 = vector.extract_strided_slice %187 {offsets = [0, 0], sizes = [8, 96], strides = [1, 1]} : vector<8x128xf32> to vector<8x96xf32>
    %189 = arith.negf %188 : vector<8x96xf32>
    %190 = math.exp %189 : vector<8x96xf32>
    %cst_53 = arith.constant 1.000000e+00 : f32
    %191 = vector.broadcast %cst_53 : f32 to vector<8x96xf32>
    %192 = arith.addf %191, %190 : vector<8x96xf32>
    %193 = arith.divf %191, %192 : vector<8x96xf32>
    %194 = vector.extract_strided_slice %187 {offsets = [0, 96], sizes = [8, 32], strides = [1, 1]} : vector<8x128xf32> to vector<8x32xf32>
    %195 = math.tanh %194 : vector<8x32xf32>
    %196 = vector.extract_strided_slice %193 {offsets = [0, 0], sizes = [8, 32], strides = [1, 1]} : vector<8x96xf32> to vector<8x32xf32>
    %197 = vector.extract_strided_slice %193 {offsets = [0, 32], sizes = [8, 32], strides = [1, 1]} : vector<8x96xf32> to vector<8x32xf32>
    %198 = vector.extract_strided_slice %193 {offsets = [0, 64], sizes = [8, 32], strides = [1, 1]} : vector<8x96xf32> to vector<8x32xf32>
    %199 = arith.mulf %197, %180 : vector<8x32xf32>
    %200 = arith.mulf %196, %195 : vector<8x32xf32>
    %201 = arith.addf %199, %200 : vector<8x32xf32>
    %202 = math.tanh %201 : vector<8x32xf32>
    %203 = arith.mulf %198, %202 : vector<8x32xf32>
    %c8_i32_54 = arith.constant 8 : i32
    %204 = arith.muli %arg0, %c8_i32_54 : i32
    %205 = arith.addi %204, %c6_i32 : i32
    %c8_i32_55 = arith.constant 8 : i32
    %206 = arith.cmpi slt, %205, %c8_i32_55 : i32
    %207 = arith.select %206, %203, %179 : vector<8x32xf32>
    %208 = arith.select %206, %201, %180 : vector<8x32xf32>
    %c7_i32 = arith.constant 7 : i32
    %c8_i32_56 = arith.constant 8 : i32
    %209 = arith.muli %c7_i32, %c8_i32_56 : i32
    %210 = tpu.assume_multiple %209, 8 : i32
    %211 = arith.index_cast %210 : i32 to index
    %c0_57 = arith.constant 0 : index
    %212 = vector.load %arg8[%211, %c0_57] : memref<64x128xf32, #tpu.memory_space<vmem>>, vector<8x128xf32>
    %213 = arith.truncf %207 : vector<8x32xf32> to vector<8x32xbf16>
    %cst_58 = arith.constant dense<0.000000e+00> : vector<8x128xf32>
    %214 = tpu.matmul %213, %10, %cst_58 {dimension_numbers = #tpu.dot_dimension_numbers<[1], [0], [0], [1], [0, 0, 1, 1], [], []>} : vector<8x32xbf16>, vector<32x128xbf16>, vector<8x128xf32> -> vector<8x128xf32>
    %215 = arith.addf %212, %214 : vector<8x128xf32>
    %216 = vector.extract_strided_slice %215 {offsets = [0, 0], sizes = [8, 96], strides = [1, 1]} : vector<8x128xf32> to vector<8x96xf32>
    %217 = arith.negf %216 : vector<8x96xf32>
    %218 = math.exp %217 : vector<8x96xf32>
    %cst_59 = arith.constant 1.000000e+00 : f32
    %219 = vector.broadcast %cst_59 : f32 to vector<8x96xf32>
    %220 = arith.addf %219, %218 : vector<8x96xf32>
    %221 = arith.divf %219, %220 : vector<8x96xf32>
    %222 = vector.extract_strided_slice %215 {offsets = [0, 96], sizes = [8, 32], strides = [1, 1]} : vector<8x128xf32> to vector<8x32xf32>
    %223 = math.tanh %222 : vector<8x32xf32>
    %224 = vector.extract_strided_slice %221 {offsets = [0, 0], sizes = [8, 32], strides = [1, 1]} : vector<8x96xf32> to vector<8x32xf32>
    %225 = vector.extract_strided_slice %221 {offsets = [0, 32], sizes = [8, 32], strides = [1, 1]} : vector<8x96xf32> to vector<8x32xf32>
    %226 = vector.extract_strided_slice %221 {offsets = [0, 64], sizes = [8, 32], strides = [1, 1]} : vector<8x96xf32> to vector<8x32xf32>
    %227 = arith.mulf %225, %208 : vector<8x32xf32>
    %228 = arith.mulf %224, %223 : vector<8x32xf32>
    %229 = arith.addf %227, %228 : vector<8x32xf32>
    %230 = math.tanh %229 : vector<8x32xf32>
    %231 = arith.mulf %226, %230 : vector<8x32xf32>
    %c8_i32_60 = arith.constant 8 : i32
    %232 = arith.muli %arg0, %c8_i32_60 : i32
    %233 = arith.addi %232, %c7_i32 : i32
    %c8_i32_61 = arith.constant 8 : i32
    %234 = arith.cmpi slt, %233, %c8_i32_61 : i32
    %235 = arith.select %234, %231, %207 : vector<8x32xf32>
    %236 = arith.select %234, %229, %208 : vector<8x32xf32>
    %c8_i32_62 = arith.constant 8 : i32
    %c0_63 = arith.constant 0 : index
    %c0_64 = arith.constant 0 : index
    %237 = vector.load %arg9[%c0_63, %c0_64] : memref<8x32xf32, #tpu.memory_space<vmem>>, vector<8x32xf32>
    tpu.vector_store %arg9[%c0_63, %c0_64], %235 {strides = array<i32>} : memref<8x32xf32, #tpu.memory_space<vmem>>, vector<8x32xf32>,
    %c0_65 = arith.constant 0 : index
    %c0_66 = arith.constant 0 : index
    %238 = vector.load %arg10[%c0_65, %c0_66] : memref<8x32xf32, #tpu.memory_space<vmem>>, vector<8x32xf32>
    tpu.vector_store %arg10[%c0_65, %c0_66], %236 {strides = array<i32>} : memref<8x32xf32, #tpu.memory_space<vmem>>, vector<8x32xf32>,
    %c0_i32_67 = arith.constant 0 : i32
    %239 = arith.cmpi eq, %arg0, %c0_i32_67 : i32
    %240 = arith.extui %239 : i1 to i32
    %c0_i32_68 = arith.constant 0 : i32
    %241 = arith.cmpi ne, %240, %c0_i32_68 : i32
    scf.if %241 {
      %242 = arith.truncf %235 : vector<8x32xf32> to vector<8x32xbf16>
      %c0_69 = arith.constant 0 : index
      %c0_70 = arith.constant 0 : index
      %243 = vector.load %arg5[%c0_69, %c0_70] : memref<32x128xbf16, #tpu.memory_space<vmem>>, vector<32x128xbf16>
      %cst_71 = arith.constant dense<0.000000e+00> : vector<8x128xf32>
      %244 = tpu.matmul %242, %243, %cst_71 {dimension_numbers = #tpu.dot_dimension_numbers<[1], [0], [0], [1], [0, 0, 1, 1], [], []>} : vector<8x32xbf16>, vector<32x128xbf16>, vector<8x128xf32> -> vector<8x128xf32>
      %c0_72 = arith.constant 0 : index
      %c0_73 = arith.constant 0 : index
      %245 = vector.load %arg6[%c0_72, %c0_73] : memref<1x128xf32, #tpu.memory_space<vmem>>, vector<1x128xf32>
      %246 = vector.broadcast %245 : vector<1x128xf32> to vector<8x128xf32>
      %247 = arith.addf %244, %246 : vector<8x128xf32>
      %c0_74 = arith.constant 0 : index
      %c0_75 = arith.constant 0 : index
      %248 = vector.load %arg7[%c0_74, %c0_75] : memref<8x128xf32, #tpu.memory_space<vmem>>, vector<8x128xf32>
      tpu.vector_store %arg7[%c0_74, %c0_75], %247 {strides = array<i32>} : memref<8x128xf32, #tpu.memory_space<vmem>>, vector<8x128xf32>,
    } else {
    }
    return
  }
  func.func @transform_0(%arg0: i32) -> (i32, i32) {
    %c0_i32 = arith.constant 0 : i32
    %c0_i32_0 = arith.constant 0 : i32
    return %arg0, %c0_i32 : i32, i32
  }
  func.func @transform_1(%arg0: i32) -> (i32, i32) {
    %c0_i32 = arith.constant 0 : i32
    %c0_i32_0 = arith.constant 0 : i32
    %c0_i32_1 = arith.constant 0 : i32
    return %c0_i32, %c0_i32_0 : i32, i32
  }
  func.func @transform_2(%arg0: i32) -> (i32, i32) {
    %c0_i32 = arith.constant 0 : i32
    %c0_i32_0 = arith.constant 0 : i32
    %c0_i32_1 = arith.constant 0 : i32
    return %c0_i32, %c0_i32_0 : i32, i32
  }
  func.func @transform_3(%arg0: i32) -> (i32, i32) {
    %c0_i32 = arith.constant 0 : i32
    %c0_i32_0 = arith.constant 0 : i32
    %c0_i32_1 = arith.constant 0 : i32
    return %c0_i32, %c0_i32_0 : i32, i32
  }
  func.func @transform_4(%arg0: i32) -> (i32, i32) {
    %c0_i32 = arith.constant 0 : i32
    %c0_i32_0 = arith.constant 0 : i32
    %c0_i32_1 = arith.constant 0 : i32
    return %c0_i32, %c0_i32_0 : i32, i32
  }
  func.func @transform_5(%arg0: i32) -> (i32, i32) {
    %c0_i32 = arith.constant 0 : i32
    %c0_i32_0 = arith.constant 0 : i32
    %c0_i32_1 = arith.constant 0 : i32
    return %c0_i32, %c0_i32_0 : i32, i32
  }
  func.func @transform_6(%arg0: i32) -> (i32, i32) {
    %c0_i32 = arith.constant 0 : i32
    %c0_i32_0 = arith.constant 0 : i32
    %c0_i32_1 = arith.constant 0 : i32
    return %c0_i32, %c0_i32_0 : i32, i32
  }
}

</mosaic_0001>

<llo_original>
// kernel: tpu_custom_call.1
$region0: #{tpu_custom_call.1}
  #allocation0 [shape = 'u32[]', space=smem, size = 0x4, offset = 0x4, fixed_abs, tag = 'smem constant byte address 0x4 - core index']
  #allocation1 [shape = 'u32[144,128]{1,0:T(1,128)}', space=vmem, size = 0x12000, scoped, tag = 'internal scratch']
  #allocation2 [shape = 'f32[64,128]{1,0:T(8,128)}', space=vmem, size = 0x8000, scoped, tag = 'scratch operand']
  #allocation3 [shape = 'f32[8,32]{1,0:T(8,128)}', space=vmem, size = 0x1000, scoped, tag = 'scratch operand']
  #allocation4 [shape = 'f32[8,32]{1,0:T(8,128)}', space=vmem, size = 0x1000, scoped, tag = 'scratch operand']
  %s0 = inlined_call_operand.vmem [shape: bf16[64,32], index: 0, kind: input, shape index: {}]
  %s1 = inlined_call_operand.vmem [shape: bf16[32,128], index: 1, kind: input, shape index: {}]
  %s2 = inlined_call_operand.vmem [shape: bf16[32,128], index: 2, kind: input, shape index: {}]
  %s3 = inlined_call_operand.vmem [shape: f32[1,128], index: 3, kind: input, shape index: {}]
  %s4 = inlined_call_operand.vmem [shape: bf16[32,128], index: 4, kind: input, shape index: {}]
  %s5 = inlined_call_operand.vmem [shape: f32[1,128], index: 5, kind: input, shape index: {}]
  %s6 = inlined_call_operand.hbm [shape: f32[8,128], index: 6, kind: output, shape index: {}]
  %s7 = sld [smem:[#allocation0]]
  $region42: #{tpu_custom_call.1} parent=0
    _
  %s9 = ssub.s32 1, %s7
  %s10 = scalar_select 0, %s9, %s7
  $region1: #{tpu_custom_call.1} parent=0
    #allocation5 [shape = 'u8[4096]{0}', space=vmem, size = 0x1000, scoped, tag = 'output window, operand 0, single buffered']
    #allocation6 [shape = 's32[1]{0}', space=sflag, size = 0x4, scoped, tag = 'scoped memory for tpu_custom_call.1']
    %11 = vsyncpa [#allocation6], 0
    // Predicated region
    $region2: #{tpu_custom_call.1} parent=1 // pred_check
      _
    $region3: #{tpu_custom_call.1} parent=1 // pred_check_branch
      %13 = sbr.rel (0) target = $region5
    $region4: #{tpu_custom_call.1} parent=1 // pred_region
      _
    $region5: #{tpu_custom_call.1} parent=1 // pred_fallthru
      _
    // Predicated region
    $region6: #{tpu_custom_call.1} parent=1 // pred_check
      _
    $region7: #{tpu_custom_call.1} parent=1 // pred_check_branch
      %15 = sbr.rel (0) target = $region9
    $region8: #{tpu_custom_call.1} parent=1 // pred_region
      _
    $region9: #{tpu_custom_call.1} parent=1 // pred_fallthru
      _
    // Predicated region
    $region10: #{tpu_custom_call.1} parent=1 // pred_check
      _
    $region11: #{tpu_custom_call.1} parent=1 // pred_check_branch
      %17 = sbr.rel (0) target = $region13
    $region12: #{tpu_custom_call.1} parent=1 // pred_region
      _
    $region13: #{tpu_custom_call.1} parent=1 // pred_fallthru
      _
    // Predicated region
    $region14: #{tpu_custom_call.1} parent=1 // pred_check
      _
    $region15: #{tpu_custom_call.1} parent=1 // pred_check_branch
      %19 = sbr.rel (0) target = $region17
    $region16: #{tpu_custom_call.1} parent=1 // pred_region
      _
    $region17: #{tpu_custom_call.1} parent=1 // pred_fallthru
      _
    // Predicated region
    $region18: #{tpu_custom_call.1} parent=1 // pred_check
      _
    $region19: #{tpu_custom_call.1} parent=1 // pred_check_branch
      %21 = sbr.rel (0) target = $region21
    $region20: #{tpu_custom_call.1} parent=1 // pred_region
      _
    $region21: #{tpu_custom_call.1} parent=1 // pred_fallthru
      _
    // Predicated region
    $region22: #{tpu_custom_call.1} parent=1 // pred_check
      _
    $region23: #{tpu_custom_call.1} parent=1 // pred_check_branch
      %23 = sbr.rel (0) target = $region25
    $region24: #{tpu_custom_call.1} parent=1 // pred_region
      _
    $region25: #{tpu_custom_call.1} parent=1 // pred_fallthru
      _
    %p25 = scmp.eq.s32.totalorder 0, 0
    // Predicated region
    $region26: #{tpu_custom_call.1} parent=1 // pred_check
      %p26 = pneg %p25
    $region27: #{tpu_custom_call.1} parent=1 // pred_check_branch
      %28 = sbr.rel (%p26) target = $region29
    $region28: #{tpu_custom_call.1} parent=1 // pred_region
      %vm29 = vcmask 261120
      %30 = vst.msk [vmem:[#allocation3] sm:$0xff] %vm29, 0.0
      %31 = vst.msk [vmem:[#allocation4] sm:$0xff] %vm29, 0.0
    $region29: #{tpu_custom_call.1} parent=1 // pred_fallthru
      _
    %v32 = vld [vmem:[%s0] sm:$0xf]
    %v33 = vld [vmem:[%s0 + $0x4] sm:$0xf]
    %v34 = vld [vmem:[%s0 + $0x8] sm:$0xf]
    %v35 = vld [vmem:[%s0 + $0xc] sm:$0xf]
    %v36 = vld [vmem:[%s0 + $0x10] sm:$0xf]
    %v37 = vld [vmem:[%s0 + $0x14] sm:$0xf]
    %v38 = vld [vmem:[%s0 + $0x18] sm:$0xf]
    %v39 = vld [vmem:[%s0 + $0x1c] sm:$0xf]
    %v40 = vld [vmem:[%s1] sm:$0xf]
    %v41 = vld [vmem:[%s1 + $0x4] sm:$0xf]
    %v42 = vld [vmem:[%s1 + $0x8] sm:$0xf]
    %v43 = vld [vmem:[%s1 + $0xc] sm:$0xf]
    %v44 = vld [vmem:[%s3] sm:$0x1]
    %v46 = vlaneseq
    %v47 = vshrl.u32 %v46, 7
    %v48 = vsub.s32 0, %v47
    %v49 = vrot.slane %v44, %v48
    %v59 = vunpack.c.l.b16 %v32
    %v60 = vunpack.c.l.b16 %v33
    %v61 = vunpack.c.l.b16 %v34
    %v62 = vunpack.c.l.b16 %v35
    %v63 = vunpack.c.l.b16 %v36
    %v64 = vunpack.c.l.b16 %v37
    %v65 = vunpack.c.l.b16 %v38
    %v66 = vunpack.c.l.b16 %v39
    %v67 = vpack.c.b16 %v60, %v59
    %v68 = vpack.c.b16 %v62, %v61
    %v69 = vpack.c.b16 %v64, %v63
    %v70 = vpack.c.b16 %v66, %v65
    %v75 = vunpack.c.l.b16 %v40
    %v76 = vunpack.c.l.b16 %v41
    %v77 = vunpack.c.l.b16 %v42
    %v78 = vunpack.c.l.b16 %v43
    %v79 = vpack.c.b16 %v76, %v75
    %v80 = vpack.c.b16 %v78, %v77
    %vm83 = vcmask 261120
    %v85 = vsel %vm83, %v67, 0
    %v88 = vsel %vm83, %v68, 0
    %v91 = vsel %vm83, %v69, 0
    %v94 = vsel %vm83, %v70, 0
    %96 = vmatprep.subr.bf16.mxu0 0
    %97 = vmatpush1.bf16.msra.mxu0 %v79
    %98 = vmatprep.subr.bf16.mxu0 0
    %99 = vmatpush1.bf16.msra.mxu0 %v80
    %100 = vmatprep.subr.bf16.mxu0 0
    %101 = vmatpush1.bf16.msra.mxu0 0
    %102 = vmatprep.subr.bf16.mxu0 0
    %103 = vmatpush1.bf16.msra.mxu0 0
    %104 = vmatprep.subr.bf16.mxu0 0
    %105 = vmatpush1.bf16.msra.mxu0 0
    %106 = vmatprep.subr.bf16.mxu0 0
    %107 = vmatpush1.bf16.msra.mxu0 0
    %108 = vmatprep.subr.bf16.mxu0 0
    %109 = vmatpush1.bf16.msra.mxu0 0
    %110 = vmatprep.subr.bf16.mxu0 0
    %111 = vmatpush1.bf16.msra.mxu0 0
    %112 = vmatprep.subr.bf16.mxu0 0
    %113 = vmatpush1.bf16.msra.mxu0 0
    %114 = vmatprep.subr.bf16.mxu0 0
    %115 = vmatpush1.bf16.msra.mxu0 0
    %116 = vmatprep.subr.bf16.mxu0 0
    %117 = vmatpush1.bf16.msra.mxu0 0
    %118 = vmatprep.subr.bf16.mxu0 0
    %119 = vmatpush1.bf16.msra.mxu0 0
    %120 = vmatprep.subr.bf16.mxu0 0
    %121 = vmatpush1.bf16.msra.mxu0 0
    %122 = vmatprep.subr.bf16.mxu0 0
    %123 = vmatpush1.bf16.msra.mxu0 0
    %124 = vmatprep.subr.bf16.mxu0 0
    %125 = vmatpush1.bf16.msra.mxu0 0
    %126 = vmatprep.subr.bf16.mxu0 0
    %127 = vmatpush1.bf16.msra.mxu0 0
    %128 = vmatprep.mubr.bf16.mxu0 0
    %129 = vmatmul.mubr.bf16.gmra.mrb[0].mxu0 %v85
    %v130 = vpop.f32.mrb[0].mxu0
    %v131 = vadd.f32 %v49, %v130
    %v132 = vpop.f32.mrb[0].mxu0
    %v133 = vpop.f32.mrb[0].mxu0
    %v134 = vadd.f32 %v49, %v133
    %v135 = vpop.f32.mrb[0].mxu0
    %136 = vmatprep.mubr.bf16.mxu0 0
    %137 = vmatmul.mubr.bf16.gmra.mrb[0].mxu0 %v88
    %v138 = vpop.f32.mrb[0].mxu0
    %v139 = vadd.f32 %v49, %v138
    %v140 = vpop.f32.mrb[0].mxu0
    %v141 = vpop.f32.mrb[0].mxu0
    %v142 = vadd.f32 %v49, %v141
    %v143 = vpop.f32.mrb[0].mxu0
    %144 = vmatprep.mubr.bf16.mxu0 0
    %145 = vmatmul.mubr.bf16.gmra.mrb[0].mxu0 %v91
    %v146 = vpop.f32.mrb[0].mxu0
    %v147 = vadd.f32 %v49, %v146
    %v148 = vpop.f32.mrb[0].mxu0
    %v149 = vpop.f32.mrb[0].mxu0
    %v150 = vadd.f32 %v49, %v149
    %v151 = vpop.f32.mrb[0].mxu0
    %152 = vmatprep.mubr.bf16.mxu0 0
    %153 = vmatmul.mubr.bf16.gmra.mrb[0].mxu0 %v94
    %v154 = vpop.f32.mrb[0].mxu0
    %v155 = vadd.f32 %v49, %v154
    %v156 = vpop.f32.mrb[0].mxu0
    %v157 = vpop.f32.mrb[0].mxu0
    %v158 = vadd.f32 %v49, %v157
    %v159 = vpop.f32.mrb[0].mxu0
    %160 = vdwg.mxu0
    %161 = vst [vmem:[#allocation2] sm:$0xff] %v131
    %162 = vst [vmem:[#allocation2 + $0x8] sm:$0xff] %v134
    %163 = vst [vmem:[#allocation2 + $0x10] sm:$0xff] %v139
    %164 = vst [vmem:[#allocation2 + $0x18] sm:$0xff] %v142
    %165 = vst [vmem:[#allocation2 + $0x20] sm:$0xff] %v147
    %166 = vst [vmem:[#allocation2 + $0x28] sm:$0xff] %v150
    %167 = vst [vmem:[#allocation2 + $0x30] sm:$0xff] %v155
    %168 = vst [vmem:[#allocation2 + $0x38] sm:$0xff] %v158
    %v169 = vld [vmem:[%s2] sm:$0xf]
    %v170 = vld [vmem:[%s2 + $0x4] sm:$0xf]
    %v171 = vld [vmem:[%s2 + $0x8] sm:$0xf]
    %v172 = vld [vmem:[%s2 + $0xc] sm:$0xf]
    %v173 = vld [vmem:[#allocation3] sm:$0xff]
    %v174 = vld [vmem:[#allocation4] sm:$0xff]
    %v175 = vld [vmem:[#allocation2] sm:$0xff]
    %v176 = vpack.c.bf16 %v173, %v173
    %v181 = vunpack.c.l.b16 %v169
    %v182 = vunpack.c.l.b16 %v170
    %v183 = vunpack.c.l.b16 %v171
    %v184 = vunpack.c.l.b16 %v172
    %v185 = vpack.c.b16 %v182, %v181
    %v186 = vpack.c.b16 %v184, %v183
    %v190 = vsel %vm83, %v176, 0
    %192 = vmatprep.subr.bf16.mxu0 0
    %193 = vmatpush1.bf16.msra.mxu0 %v185
    %194 = vmatprep.subr.bf16.mxu0 0
    %195 = vmatpush1.bf16.msra.mxu0 %v186
    %196 = vmatprep.subr.bf16.mxu0 0
    %197 = vmatpush1.bf16.msra.mxu0 0
    %198 = vmatprep.subr.bf16.mxu0 0
    %199 = vmatpush1.bf16.msra.mxu0 0
    %200 = vmatprep.subr.bf16.mxu0 0
    %201 = vmatpush1.bf16.msra.mxu0 0
    %202 = vmatprep.subr.bf16.mxu0 0
    %203 = vmatpush1.bf16.msra.mxu0 0
    %204 = vmatprep.subr.bf16.mxu0 0
    %205 = vmatpush1.bf16.msra.mxu0 0
    %206 = vmatprep.subr.bf16.mxu0 0
    %207 = vmatpush1.bf16.msra.mxu0 0
    %208 = vmatprep.subr.bf16.mxu0 0
    %209 = vmatpush1.bf16.msra.mxu0 0
    %210 = vmatprep.subr.bf16.mxu0 0
    %211 = vmatpush1.bf16.msra.mxu0 0
    %212 = vmatprep.subr.bf16.mxu0 0
    %213 = vmatpush1.bf16.msra.mxu0 0
    %214 = vmatprep.subr.bf16.mxu0 0
    %215 = vmatpush1.bf16.msra.mxu0 0
    %216 = vmatprep.subr.bf16.mxu0 0
    %217 = vmatpush1.bf16.msra.mxu0 0
    %218 = vmatprep.subr.bf16.mxu0 0
    %219 = vmatpush1.bf16.msra.mxu0 0
    %220 = vmatprep.subr.bf16.mxu0 0
    %221 = vmatpush1.bf16.msra.mxu0 0
    %222 = vmatprep.subr.bf16.mxu0 0
    %223 = vmatpush1.bf16.msra.mxu0 0
    %224 = vmatprep.mubr.bf16.mxu0 0
    %225 = vmatmul.mubr.bf16.gmra.mrb[0].mxu0 %v190
    %v226 = vpop.f32.mrb[0].mxu0
    %v227 = vadd.f32 0.0, %v226
    %v228 = vpop.f32.mrb[0].mxu0
    %v229 = vpop.f32.mrb[0].mxu0
    %v230 = vpop.f32.mrb[0].mxu0
    %231 = vdwg.mxu0
    %v232 = vadd.f32 %v175, %v227
    %v233 = vxor.u32 %v232, 2147483648
    %v234 = vmul.f32 %v233, 1.442695
    %v235 = vpow.pop %v234
    %v236 = vadd.f32 %v235, 1.0
    %v237 = vrcp.pop %v236
    %v238 = vmul.f32 1.0, %v237
    %v239 = vtanh.pop %v232
    %241 = vrot.lane.b32.xlu0 %v174, 32
    %v242 = vpop.permute.xlu0 %241
    %v244 = vmul.f32 %v238, %v242
    %246 = vrot.lane.b32.xlu0 %v239, 32
    %v247 = vpop.permute.xlu0 %246
    %v249 = vmul.f32 %v238, %v247
    %251 = vrot.lane.b32.xlu0 %v249, 32
    %v252 = vpop.permute.xlu0 %251
    %v254 = vadd.f32 %v244, %v252
    %v255 = vtanh.pop %v254
    %257 = vrot.lane.b32.xlu0 %v255, 32
    %v258 = vpop.permute.xlu0 %257
    %v260 = vmul.f32 %v238, %v258
    %s261 = smul.u32 0, 8
    %p262 = scmp.lt.s32.totalorder %s261, 8
    %s263 = scalar_select %p262, 1, 0
    %v264 = vstv %s263
    %vm265 = vcmp.eq.s32.totalorder %v264, 1
    %267 = vrot.lane.b32.xlu0 %v173, 64
    %v268 = vpop.permute.xlu0 %267
    %v270 = vsel %vm265, %v260, %v268
    %v271 = vsel %vm265, %v254, %v242
    %s272 = scalar_lea.vmem [#allocation2], 8
    %v273 = vld [vmem:[%s272] sm:$0xff]
    %v274 = vpack.c.bf16 %v270, %v270
    %276 = vrot.lane.b32.xlu0 %v274, 64
    %v277 = vpop.permute.xlu0 %276
    %v279 = vsel %vm83, %v277, 0
    %281 = vmatprep.subr.bf16.mxu0 0
    %282 = vmatpush1.bf16.msra.mxu0 %v185
    %283 = vmatprep.subr.bf16.mxu0 0
    %284 = vmatpush1.bf16.msra.mxu0 %v186
    %285 = vmatprep.subr.bf16.mxu0 0
    %286 = vmatpush1.bf16.msra.mxu0 0
    %287 = vmatprep.subr.bf16.mxu0 0
    %288 = vmatpush1.bf16.msra.mxu0 0
    %289 = vmatprep.subr.bf16.mxu0 0
    %290 = vmatpush1.bf16.msra.mxu0 0
    %291 = vmatprep.subr.bf16.mxu0 0
    %292 = vmatpush1.bf16.msra.mxu0 0
    %293 = vmatprep.subr.bf16.mxu0 0
    %294 = vmatpush1.bf16.msra.mxu0 0
    %295 = vmatprep.subr.bf16.mxu0 0
    %296 = vmatpush1.bf16.msra.mxu0 0
    %297 = vmatprep.subr.bf16.mxu0 0
    %298 = vmatpush1.bf16.msra.mxu0 0
    %299 = vmatprep.subr.bf16.mxu0 0
    %300 = vmatpush1.bf16.msra.mxu0 0
    %301 = vmatprep.subr.bf16.mxu0 0
    %302 = vmatpush1.bf16.msra.mxu0 0
    %303 = vmatprep.subr.bf16.mxu0 0
    %304 = vmatpush1.bf16.msra.mxu0 0
    %305 = vmatprep.subr.bf16.mxu0 0
    %306 = vmatpush1.bf16.msra.mxu0 0
    %307 = vmatprep.subr.bf16.mxu0 0
    %308 = vmatpush1.bf16.msra.mxu0 0
    %309 = vmatprep.subr.bf16.mxu0 0
    %310 = vmatpush1.bf16.msra.mxu0 0
    %311 = vmatprep.subr.bf16.mxu0 0
    %312 = vmatpush1.bf16.msra.mxu0 0
    %313 = vmatprep.mubr.bf16.mxu0 0
    %314 = vmatmul.mubr.bf16.gmra.mrb[0].mxu0 %v279
    %v315 = vpop.f32.mrb[0].mxu0
    %v316 = vadd.f32 0.0, %v315
    %v317 = vpop.f32.mrb[0].mxu0
    %v318 = vpop.f32.mrb[0].mxu0
    %v319 = vpop.f32.mrb[0].mxu0
    %320 = vdwg.mxu0
    %v321 = vadd.f32 %v273, %v316
    %v322 = vxor.u32 %v321, 2147483648
    %v323 = vmul.f32 %v322, 1.442695
    %v324 = vpow.pop %v323
    %v325 = vadd.f32 %v324, 1.0
    %v326 = vrcp.pop %v325
    %v327 = vmul.f32 1.0, %v326
    %v328 = vtanh.pop %v321
    %v329 = vmul.f32 %v327, %v271
    %331 = vrot.lane.b32.xlu0 %v328, 32
    %v332 = vpop.permute.xlu0 %331
    %v334 = vmul.f32 %v327, %v332
    %336 = vrot.lane.b32.xlu0 %v334, 32
    %v337 = vpop.permute.xlu0 %336
    %v339 = vadd.f32 %v329, %v337
    %v340 = vtanh.pop %v339
    %342 = vrot.lane.b32.xlu0 %v340, 32
    %v343 = vpop.permute.xlu0 %342
    %v345 = vmul.f32 %v327, %v343
    %s346 = sadd.s32 %s261, 1
    %p347 = scmp.lt.s32.totalorder %s346, 8
    %s348 = scalar_select %p347, 1, 0
    %v349 = vstv %s348
    %vm350 = vcmp.eq.s32.totalorder %v349, 1
    %v351 = vsel %vm350, %v345, %v270
    %v352 = vsel %vm350, %v339, %v271
    %s353 = scalar_lea.vmem [#allocation2], 16
    %v354 = vld [vmem:[%s353] sm:$0xff]
    %v355 = vpack.c.bf16 %v351, %v351
    %357 = vrot.lane.b32.xlu0 %v355, 64
    %v358 = vpop.permute.xlu0 %357
    %v360 = vsel %vm83, %v358, 0
    %362 = vmatprep.subr.bf16.mxu0 0
    %363 = vmatpush1.bf16.msra.mxu0 %v185
    %364 = vmatprep.subr.bf16.mxu0 0
    %365 = vmatpush1.bf16.msra.mxu0 %v186
    %366 = vmatprep.subr.bf16.mxu0 0
    %367 = vmatpush1.bf16.msra.mxu0 0
    %368 = vmatprep.subr.bf16.mxu0 0
    %369 = vmatpush1.bf16.msra.mxu0 0
    %370 = vmatprep.subr.bf16.mxu0 0
    %371 = vmatpush1.bf16.msra.mxu0 0
    %372 = vmatprep.subr.bf16.mxu0 0
    %373 = vmatpush1.bf16.msra.mxu0 0
    %374 = vmatprep.subr.bf16.mxu0 0
    %375 = vmatpush1.bf16.msra.mxu0 0
    %376 = vmatprep.subr.bf16.mxu0 0
    %377 = vmatpush1.bf16.msra.mxu0 0
    %378 = vmatprep.subr.bf16.mxu0 0
    %379 = vmatpush1.bf16.msra.mxu0 0
    %380 = vmatprep.subr.bf16.mxu0 0
    %381 = vmatpush1.bf16.msra.mxu0 0
    %382 = vmatprep.subr.bf16.mxu0 0
    %383 = vmatpush1.bf16.msra.mxu0 0
    %384 = vmatprep.subr.bf16.mxu0 0
    %385 = vmatpush1.bf16.msra.mxu0 0
    %386 = vmatprep.subr.bf16.mxu0 0
    %387 = vmatpush1.bf16.msra.mxu0 0
    %388 = vmatprep.subr.bf16.mxu0 0
    %389 = vmatpush1.bf16.msra.mxu0 0
    %390 = vmatprep.subr.bf16.mxu0 0
    %391 = vmatpush1.bf16.msra.mxu0 0
    %392 = vmatprep.subr.bf16.mxu0 0
    %393 = vmatpush1.bf16.msra.mxu0 0
    %394 = vmatprep.mubr.bf16.mxu0 0
    %395 = vmatmul.mubr.bf16.gmra.mrb[0].mxu0 %v360
    %v396 = vpop.f32.mrb[0].mxu0
    %v397 = vadd.f32 0.0, %v396
    %v398 = vpop.f32.mrb[0].mxu0
    %v399 = vpop.f32.mrb[0].mxu0
    %v400 = vpop.f32.mrb[0].mxu0
    %401 = vdwg.mxu0
    %v402 = vadd.f32 %v354, %v397
    %v403 = vxor.u32 %v402, 2147483648
    %v404 = vmul.f32 %v403, 1.442695
    %v405 = vpow.pop %v404
    %v406 = vadd.f32 %v405, 1.0
    %v407 = vrcp.pop %v406
    %v408 = vmul.f32 1.0, %v407
    %v409 = vtanh.pop %v402
    %v410 = vmul.f32 %v408, %v352
    %412 = vrot.lane.b32.xlu0 %v409, 32
    %v413 = vpop.permute.xlu0 %412
    %v415 = vmul.f32 %v408, %v413
    %417 = vrot.lane.b32.xlu0 %v415, 32
    %v418 = vpop.permute.xlu0 %417
    %v420 = vadd.f32 %v410, %v418
    %v421 = vtanh.pop %v420
    %423 = vrot.lane.b32.xlu0 %v421, 32
    %v424 = vpop.permute.xlu0 %423
    %v426 = vmul.f32 %v408, %v424
    %s427 = sadd.s32 %s261, 2
    %p428 = scmp.lt.s32.totalorder %s427, 8
    %s429 = scalar_select %p428, 1, 0
    %v430 = vstv %s429
    %vm431 = vcmp.eq.s32.totalorder %v430, 1
    %v432 = vsel %vm431, %v426, %v351
    %v433 = vsel %vm431, %v420, %v352
    %s434 = scalar_lea.vmem [#allocation2], 24
    %v435 = vld [vmem:[%s434] sm:$0xff]
    %v436 = vpack.c.bf16 %v432, %v432
    %438 = vrot.lane.b32.xlu0 %v436, 64
    %v439 = vpop.permute.xlu0 %438
    %v441 = vsel %vm83, %v439, 0
    %443 = vmatprep.subr.bf16.mxu0 0
    %444 = vmatpush1.bf16.msra.mxu0 %v185
    %445 = vmatprep.subr.bf16.mxu0 0
    %446 = vmatpush1.bf16.msra.mxu0 %v186
    %447 = vmatprep.subr.bf16.mxu0 0
    %448 = vmatpush1.bf16.msra.mxu0 0
    %449 = vmatprep.subr.bf16.mxu0 0
    %450 = vmatpush1.bf16.msra.mxu0 0
    %451 = vmatprep.subr.bf16.mxu0 0
    %452 = vmatpush1.bf16.msra.mxu0 0
    %453 = vmatprep.subr.bf16.mxu0 0
    %454 = vmatpush1.bf16.msra.mxu0 0
    %455 = vmatprep.subr.bf16.mxu0 0
    %456 = vmatpush1.bf16.msra.mxu0 0
    %457 = vmatprep.subr.bf16.mxu0 0
    %458 = vmatpush1.bf16.msra.mxu0 0
    %459 = vmatprep.subr.bf16.mxu0 0
    %460 = vmatpush1.bf16.msra.mxu0 0
    %461 = vmatprep.subr.bf16.mxu0 0
    %462 = vmatpush1.bf16.msra.mxu0 0
    %463 = vmatprep.subr.bf16.mxu0 0
    %464 = vmatpush1.bf16.msra.mxu0 0
    %465 = vmatprep.subr.bf16.mxu0 0
    %466 = vmatpush1.bf16.msra.mxu0 0
    %467 = vmatprep.subr.bf16.mxu0 0
    %468 = vmatpush1.bf16.msra.mxu0 0
    %469 = vmatprep.subr.bf16.mxu0 0
    %470 = vmatpush1.bf16.msra.mxu0 0
    %471 = vmatprep.subr.bf16.mxu0 0
    %472 = vmatpush1.bf16.msra.mxu0 0
    %473 = vmatprep.subr.bf16.mxu0 0
    %474 = vmatpush1.bf16.msra.mxu0 0
    %475 = vmatprep.mubr.bf16.mxu0 0
    %476 = vmatmul.mubr.bf16.gmra.mrb[0].mxu0 %v441
    %v477 = vpop.f32.mrb[0].mxu0
    %v478 = vadd.f32 0.0, %v477
    %v479 = vpop.f32.mrb[0].mxu0
    %v480 = vpop.f32.mrb[0].mxu0
    %v481 = vpop.f32.mrb[0].mxu0
    %482 = vdwg.mxu0
    %v483 = vadd.f32 %v435, %v478
    %v484 = vxor.u32 %v483, 2147483648
    %v485 = vmul.f32 %v484, 1.442695
    %v486 = vpow.pop %v485
    %v487 = vadd.f32 %v486, 1.0
    %v488 = vrcp.pop %v487
    %v489 = vmul.f32 1.0, %v488
    %v490 = vtanh.pop %v483
    %v491 = vmul.f32 %v489, %v433
    %493 = vrot.lane.b32.xlu0 %v490, 32
    %v494 = vpop.permute.xlu0 %493
    %v496 = vmul.f32 %v489, %v494
    %498 = vrot.lane.b32.xlu0 %v496, 32
    %v499 = vpop.permute.xlu0 %498
    %v501 = vadd.f32 %v491, %v499
    %v502 = vtanh.pop %v501
    %504 = vrot.lane.b32.xlu0 %v502, 32
    %v505 = vpop.permute.xlu0 %504
    %v507 = vmul.f32 %v489, %v505
    %s508 = sadd.s32 %s261, 3
    %p509 = scmp.lt.s32.totalorder %s508, 8
    %s510 = scalar_select %p509, 1, 0
    %v511 = vstv %s510
    %vm512 = vcmp.eq.s32.totalorder %v511, 1
    %v513 = vsel %vm512, %v507, %v432
    %v514 = vsel %vm512, %v501, %v433
    %s515 = scalar_lea.vmem [#allocation2], 32
    %v516 = vld [vmem:[%s515] sm:$0xff]
    %v517 = vpack.c.bf16 %v513, %v513
    %519 = vrot.lane.b32.xlu0 %v517, 64
    %v520 = vpop.permute.xlu0 %519
    %v522 = vsel %vm83, %v520, 0
    %524 = vmatprep.subr.bf16.mxu0 0
    %525 = vmatpush1.bf16.msra.mxu0 %v185
    %526 = vmatprep.subr.bf16.mxu0 0
    %527 = vmatpush1.bf16.msra.mxu0 %v186
    %528 = vmatprep.subr.bf16.mxu0 0
    %529 = vmatpush1.bf16.msra.mxu0 0
    %530 = vmatprep.subr.bf16.mxu0 0
    %531 = vmatpush1.bf16.msra.mxu0 0
    %532 = vmatprep.subr.bf16.mxu0 0
    %533 = vmatpush1.bf16.msra.mxu0 0
    %534 = vmatprep.subr.bf16.mxu0 0
    %535 = vmatpush1.bf16.msra.mxu0 0
    %536 = vmatprep.subr.bf16.mxu0 0
    %537 = vmatpush1.bf16.msra.mxu0 0
    %538 = vmatprep.subr.bf16.mxu0 0
    %539 = vmatpush1.bf16.msra.mxu0 0
    %540 = vmatprep.subr.bf16.mxu0 0
    %541 = vmatpush1.bf16.msra.mxu0 0
    %542 = vmatprep.subr.bf16.mxu0 0
    %543 = vmatpush1.bf16.msra.mxu0 0
    %544 = vmatprep.subr.bf16.mxu0 0
    %545 = vmatpush1.bf16.msra.mxu0 0
    %546 = vmatprep.subr.bf16.mxu0 0
    %547 = vmatpush1.bf16.msra.mxu0 0
    %548 = vmatprep.subr.bf16.mxu0 0
    %549 = vmatpush1.bf16.msra.mxu0 0
    %550 = vmatprep.subr.bf16.mxu0 0
    %551 = vmatpush1.bf16.msra.mxu0 0
    %552 = vmatprep.subr.bf16.mxu0 0
    %553 = vmatpush1.bf16.msra.mxu0 0
    %554 = vmatprep.subr.bf16.mxu0 0
    %555 = vmatpush1.bf16.msra.mxu0 0
    %556 = vmatprep.mubr.bf16.mxu0 0
    %557 = vmatmul.mubr.bf16.gmra.mrb[0].mxu0 %v522
    %v558 = vpop.f32.mrb[0].mxu0
    %v559 = vadd.f32 0.0, %v558
    %v560 = vpop.f32.mrb[0].mxu0
    %v561 = vpop.f32.mrb[0].mxu0
    %v562 = vpop.f32.mrb[0].mxu0
    %563 = vdwg.mxu0
    %v564 = vadd.f32 %v516, %v559
    %v565 = vxor.u32 %v564, 2147483648
    %v566 = vmul.f32 %v565, 1.442695
    %v567 = vpow.pop %v566
    %v568 = vadd.f32 %v567, 1.0
    %v569 = vrcp.pop %v568
    %v570 = vmul.f32 1.0, %v569
    %v571 = vtanh.pop %v564
    %v572 = vmul.f32 %v570, %v514
    %574 = vrot.lane.b32.xlu0 %v571, 32
    %v575 = vpop.permute.xlu0 %574
    %v577 = vmul.f32 %v570, %v575
    %579 = vrot.lane.b32.xlu0 %v577, 32
    %v580 = vpop.permute.xlu0 %579
    %v582 = vadd.f32 %v572, %v580
    %v583 = vtanh.pop %v582
    %585 = vrot.lane.b32.xlu0 %v583, 32
    %v586 = vpop.permute.xlu0 %585
    %v588 = vmul.f32 %v570, %v586
    %s589 = sadd.s32 %s261, 4
    %p590 = scmp.lt.s32.totalorder %s589, 8
    %s591 = scalar_select %p590, 1, 0
    %v592 = vstv %s591
    %vm593 = vcmp.eq.s32.totalorder %v592, 1
    %v594 = vsel %vm593, %v588, %v513
    %v595 = vsel %vm593, %v582, %v514
    %s596 = scalar_lea.vmem [#allocation2], 40
    %v597 = vld [vmem:[%s596] sm:$0xff]
    %v598 = vpack.c.bf16 %v594, %v594
    %600 = vrot.lane.b32.xlu0 %v598, 64
    %v601 = vpop.permute.xlu0 %600
    %v603 = vsel %vm83, %v601, 0
    %605 = vmatprep.subr.bf16.mxu0 0
    %606 = vmatpush1.bf16.msra.mxu0 %v185
    %607 = vmatprep.subr.bf16.mxu0 0
    %608 = vmatpush1.bf16.msra.mxu0 %v186
    %609 = vmatprep.subr.bf16.mxu0 0
    %610 = vmatpush1.bf16.msra.mxu0 0
    %611 = vmatprep.subr.bf16.mxu0 0
    %612 = vmatpush1.bf16.msra.mxu0 0
    %613 = vmatprep.subr.bf16.mxu0 0
    %614 = vmatpush1.bf16.msra.mxu0 0
    %615 = vmatprep.subr.bf16.mxu0 0
    %616 = vmatpush1.bf16.msra.mxu0 0
    %617 = vmatprep.subr.bf16.mxu0 0
    %618 = vmatpush1.bf16.msra.mxu0 0
    %619 = vmatprep.subr.bf16.mxu0 0
    %620 = vmatpush1.bf16.msra.mxu0 0
    %621 = vmatprep.subr.bf16.mxu0 0
    %622 = vmatpush1.bf16.msra.mxu0 0
    %623 = vmatprep.subr.bf16.mxu0 0
    %624 = vmatpush1.bf16.msra.mxu0 0
    %625 = vmatprep.subr.bf16.mxu0 0
    %626 = vmatpush1.bf16.msra.mxu0 0
    %627 = vmatprep.subr.bf16.mxu0 0
    %628 = vmatpush1.bf16.msra.mxu0 0
    %629 = vmatprep.subr.bf16.mxu0 0
    %630 = vmatpush1.bf16.msra.mxu0 0
    %631 = vmatprep.subr.bf16.mxu0 0
    %632 = vmatpush1.bf16.msra.mxu0 0
    %633 = vmatprep.subr.bf16.mxu0 0
    %634 = vmatpush1.bf16.msra.mxu0 0
    %635 = vmatprep.subr.bf16.mxu0 0
    %636 = vmatpush1.bf16.msra.mxu0 0
    %637 = vmatprep.mubr.bf16.mxu0 0
    %638 = vmatmul.mubr.bf16.gmra.mrb[0].mxu0 %v603
    %v639 = vpop.f32.mrb[0].mxu0
    %v640 = vadd.f32 0.0, %v639
    %v641 = vpop.f32.mrb[0].mxu0
    %v642 = vpop.f32.mrb[0].mxu0
    %v643 = vpop.f32.mrb[0].mxu0
    %644 = vdwg.mxu0
    %v645 = vadd.f32 %v597, %v640
    %v646 = vxor.u32 %v645, 2147483648
    %v647 = vmul.f32 %v646, 1.442695
    %v648 = vpow.pop %v647
    %v649 = vadd.f32 %v648, 1.0
    %v650 = vrcp.pop %v649
    %v651 = vmul.f32 1.0, %v650
    %v652 = vtanh.pop %v645
    %v653 = vmul.f32 %v651, %v595
    %655 = vrot.lane.b32.xlu0 %v652, 32
    %v656 = vpop.permute.xlu0 %655
    %v658 = vmul.f32 %v651, %v656
    %660 = vrot.lane.b32.xlu0 %v658, 32
    %v661 = vpop.permute.xlu0 %660
    %v663 = vadd.f32 %v653, %v661
    %v664 = vtanh.pop %v663
    %666 = vrot.lane.b32.xlu0 %v664, 32
    %v667 = vpop.permute.xlu0 %666
    %v669 = vmul.f32 %v651, %v667
    %s670 = sadd.s32 %s261, 5
    %p671 = scmp.lt.s32.totalorder %s670, 8
    %s672 = scalar_select %p671, 1, 0
    %v673 = vstv %s672
    %vm674 = vcmp.eq.s32.totalorder %v673, 1
    %v675 = vsel %vm674, %v669, %v594
    %v676 = vsel %vm674, %v663, %v595
    %s677 = scalar_lea.vmem [#allocation2], 48
    %v678 = vld [vmem:[%s677] sm:$0xff]
    %v679 = vpack.c.bf16 %v675, %v675
    %681 = vrot.lane.b32.xlu0 %v679, 64
    %v682 = vpop.permute.xlu0 %681
    %v684 = vsel %vm83, %v682, 0
    %686 = vmatprep.subr.bf16.mxu0 0
    %687 = vmatpush1.bf16.msra.mxu0 %v185
    %688 = vmatprep.subr.bf16.mxu0 0
    %689 = vmatpush1.bf16.msra.mxu0 %v186
    %690 = vmatprep.subr.bf16.mxu0 0
    %691 = vmatpush1.bf16.msra.mxu0 0
    %692 = vmatprep.subr.bf16.mxu0 0
    %693 = vmatpush1.bf16.msra.mxu0 0
    %694 = vmatprep.subr.bf16.mxu0 0
    %695 = vmatpush1.bf16.msra.mxu0 0
    %696 = vmatprep.subr.bf16.mxu0 0
    %697 = vmatpush1.bf16.msra.mxu0 0
    %698 = vmatprep.subr.bf16.mxu0 0
    %699 = vmatpush1.bf16.msra.mxu0 0
    %700 = vmatprep.subr.bf16.mxu0 0
    %701 = vmatpush1.bf16.msra.mxu0 0
    %702 = vmatprep.subr.bf16.mxu0 0
    %703 = vmatpush1.bf16.msra.mxu0 0
    %704 = vmatprep.subr.bf16.mxu0 0
    %705 = vmatpush1.bf16.msra.mxu0 0
    %706 = vmatprep.subr.bf16.mxu0 0
    %707 = vmatpush1.bf16.msra.mxu0 0
    %708 = vmatprep.subr.bf16.mxu0 0
    %709 = vmatpush1.bf16.msra.mxu0 0
    %710 = vmatprep.subr.bf16.mxu0 0
    %711 = vmatpush1.bf16.msra.mxu0 0
    %712 = vmatprep.subr.bf16.mxu0 0
    %713 = vmatpush1.bf16.msra.mxu0 0
    %714 = vmatprep.subr.bf16.mxu0 0
    %715 = vmatpush1.bf16.msra.mxu0 0
    %716 = vmatprep.subr.bf16.mxu0 0
    %717 = vmatpush1.bf16.msra.mxu0 0
    %718 = vmatprep.mubr.bf16.mxu0 0
    %719 = vmatmul.mubr.bf16.gmra.mrb[0].mxu0 %v684
    %v720 = vpop.f32.mrb[0].mxu0
    %v721 = vadd.f32 0.0, %v720
    %v722 = vpop.f32.mrb[0].mxu0
    %v723 = vpop.f32.mrb[0].mxu0
    %v724 = vpop.f32.mrb[0].mxu0
    %725 = vdwg.mxu0
    %v726 = vadd.f32 %v678, %v721
    %v727 = vxor.u32 %v726, 2147483648
    %v728 = vmul.f32 %v727, 1.442695
    %v729 = vpow.pop %v728
    %v730 = vadd.f32 %v729, 1.0
    %v731 = vrcp.pop %v730
    %v732 = vmul.f32 1.0, %v731
    %v733 = vtanh.pop %v726
    %v734 = vmul.f32 %v732, %v676
    %736 = vrot.lane.b32.xlu0 %v733, 32
    %v737 = vpop.permute.xlu0 %736
    %v739 = vmul.f32 %v732, %v737
    %741 = vrot.lane.b32.xlu0 %v739, 32
    %v742 = vpop.permute.xlu0 %741
    %v744 = vadd.f32 %v734, %v742
    %v745 = vtanh.pop %v744
    %747 = vrot.lane.b32.xlu0 %v745, 32
    %v748 = vpop.permute.xlu0 %747
    %v750 = vmul.f32 %v732, %v748
    %s751 = sadd.s32 %s261, 6
    %p752 = scmp.lt.s32.totalorder %s751, 8
    %s753 = scalar_select %p752, 1, 0
    %v754 = vstv %s753
    %vm755 = vcmp.eq.s32.totalorder %v754, 1
    %v756 = vsel %vm755, %v750, %v675
    %v757 = vsel %vm755, %v744, %v676
    %s758 = scalar_lea.vmem [#allocation2], 56
    %v759 = vld [vmem:[%s758] sm:$0xff]
    %v760 = vpack.c.bf16 %v756, %v756
    %762 = vrot.lane.b32.xlu0 %v760, 64
    %v763 = vpop.permute.xlu0 %762
    %v765 = vsel %vm83, %v763, 0
    %767 = vmatprep.subr.bf16.mxu0 0
    %768 = vmatpush1.bf16.msra.mxu0 %v185
    %769 = vmatprep.subr.bf16.mxu0 0
    %770 = vmatpush1.bf16.msra.mxu0 %v186
    %771 = vmatprep.subr.bf16.mxu0 0
    %772 = vmatpush1.bf16.msra.mxu0 0
    %773 = vmatprep.subr.bf16.mxu0 0
    %774 = vmatpush1.bf16.msra.mxu0 0
    %775 = vmatprep.subr.bf16.mxu0 0
    %776 = vmatpush1.bf16.msra.mxu0 0
    %777 = vmatprep.subr.bf16.mxu0 0
    %778 = vmatpush1.bf16.msra.mxu0 0
    %779 = vmatprep.subr.bf16.mxu0 0
    %780 = vmatpush1.bf16.msra.mxu0 0
    %781 = vmatprep.subr.bf16.mxu0 0
    %782 = vmatpush1.bf16.msra.mxu0 0
    %783 = vmatprep.subr.bf16.mxu0 0
    %784 = vmatpush1.bf16.msra.mxu0 0
    %785 = vmatprep.subr.bf16.mxu0 0
    %786 = vmatpush1.bf16.msra.mxu0 0
    %787 = vmatprep.subr.bf16.mxu0 0
    %788 = vmatpush1.bf16.msra.mxu0 0
    %789 = vmatprep.subr.bf16.mxu0 0
    %790 = vmatpush1.bf16.msra.mxu0 0
    %791 = vmatprep.subr.bf16.mxu0 0
    %792 = vmatpush1.bf16.msra.mxu0 0
    %793 = vmatprep.subr.bf16.mxu0 0
    %794 = vmatpush1.bf16.msra.mxu0 0
    %795 = vmatprep.subr.bf16.mxu0 0
    %796 = vmatpush1.bf16.msra.mxu0 0
    %797 = vmatprep.subr.bf16.mxu0 0
    %798 = vmatpush1.bf16.msra.mxu0 0
    %799 = vmatprep.mubr.bf16.mxu0 0
    %800 = vmatmul.mubr.bf16.gmra.mrb[0].mxu0 %v765
    %v801 = vpop.f32.mrb[0].mxu0
    %v802 = vadd.f32 0.0, %v801
    %v803 = vpop.f32.mrb[0].mxu0
    %v804 = vpop.f32.mrb[0].mxu0
    %v805 = vpop.f32.mrb[0].mxu0
    %806 = vdwg.mxu0
    %v807 = vadd.f32 %v759, %v802
    %v808 = vxor.u32 %v807, 2147483648
    %v809 = vmul.f32 %v808, 1.442695
    %v810 = vpow.pop %v809
    %v811 = vadd.f32 %v810, 1.0
    %v812 = vrcp.pop %v811
    %v813 = vmul.f32 1.0, %v812
    %v814 = vtanh.pop %v807
    %v815 = vmul.f32 %v813, %v757
    %817 = vrot.lane.b32.xlu0 %v814, 32
    %v818 = vpop.permute.xlu0 %817
    %v820 = vmul.f32 %v813, %v818
    %822 = vrot.lane.b32.xlu0 %v820, 32
    %v823 = vpop.permute.xlu0 %822
    %v825 = vadd.f32 %v815, %v823
    %v826 = vtanh.pop %v825
    %828 = vrot.lane.b32.xlu0 %v826, 32
    %v829 = vpop.permute.xlu0 %828
    %v831 = vmul.f32 %v813, %v829
    %s832 = sadd.s32 %s261, 7
    %p833 = scmp.lt.s32.totalorder %s832, 8
    %s834 = scalar_select %p833, 1, 0
    %v835 = vstv %s834
    %vm836 = vcmp.eq.s32.totalorder %v835, 1
    %v837 = vsel %vm836, %v831, %v756
    %v838 = vsel %vm836, %v825, %v757
    %840 = vrot.lane.b32.xlu0 %v837, 64
    %v841 = vpop.permute.xlu0 %840
    %843 = vst.msk [vmem:[#allocation3] sm:$0xff] %vm83, %v841
    %845 = vrot.lane.b32.xlu0 %v838, 96
    %v846 = vpop.permute.xlu0 %845
    %848 = vst.msk [vmem:[#allocation4] sm:$0xff] %vm83, %v846
    // Predicated region
    $region30: #{tpu_custom_call.1} parent=1 // pred_check
      %p849 = pneg %p25
    $region31: #{tpu_custom_call.1} parent=1 // pred_check_branch
      %851 = sbr.rel (%p849) target = $region33
    $region32: #{tpu_custom_call.1} parent=1 // pred_region
      %v852 = vpack.c.bf16 %v837, %v837
      %v853 = vld [vmem:[%s4] sm:$0xf]
      %v854 = vld [vmem:[%s4 + $0x4] sm:$0xf]
      %v855 = vld [vmem:[%s4 + $0x8] sm:$0xf]
      %v856 = vld [vmem:[%s4 + $0xc] sm:$0xf]
      %v857 = vld [vmem:[%s5] sm:$0x1]
      %v859 = vlaneseq
      %v860 = vshrl.u32 %v859, 7
      %v861 = vsub.s32 0, %v860
      %v862 = vrot.slane %v857, %v861
      %865 = vrot.lane.b32.xlu0 %v852, 64
      %v866 = vpop.permute.xlu0 %865
      %v871 = vunpack.c.l.b16 %v853
      %v872 = vunpack.c.l.b16 %v854
      %v873 = vunpack.c.l.b16 %v855
      %v874 = vunpack.c.l.b16 %v856
      %v875 = vpack.c.b16 %v872, %v871
      %v876 = vpack.c.b16 %v874, %v873
      %v880 = vsel %vm83, %v866, 0
      %882 = vmatprep.subr.bf16.mxu0 0
      %883 = vmatpush1.bf16.msra.mxu0 %v875
      %884 = vmatprep.subr.bf16.mxu0 0
      %885 = vmatpush1.bf16.msra.mxu0 %v876
      %886 = vmatprep.subr.bf16.mxu0 0
      %887 = vmatpush1.bf16.msra.mxu0 0
      %888 = vmatprep.subr.bf16.mxu0 0
      %889 = vmatpush1.bf16.msra.mxu0 0
      %890 = vmatprep.subr.bf16.mxu0 0
      %891 = vmatpush1.bf16.msra.mxu0 0
      %892 = vmatprep.subr.bf16.mxu0 0
      %893 = vmatpush1.bf16.msra.mxu0 0
      %894 = vmatprep.subr.bf16.mxu0 0
      %895 = vmatpush1.bf16.msra.mxu0 0
      %896 = vmatprep.subr.bf16.mxu0 0
      %897 = vmatpush1.bf16.msra.mxu0 0
      %898 = vmatprep.subr.bf16.mxu0 0
      %899 = vmatpush1.bf16.msra.mxu0 0
      %900 = vmatprep.subr.bf16.mxu0 0
      %901 = vmatpush1.bf16.msra.mxu0 0
      %902 = vmatprep.subr.bf16.mxu0 0
      %903 = vmatpush1.bf16.msra.mxu0 0
      %904 = vmatprep.subr.bf16.mxu0 0
      %905 = vmatpush1.bf16.msra.mxu0 0
      %906 = vmatprep.subr.bf16.mxu0 0
      %907 = vmatpush1.bf16.msra.mxu0 0
      %908 = vmatprep.subr.bf16.mxu0 0
      %909 = vmatpush1.bf16.msra.mxu0 0
      %910 = vmatprep.subr.bf16.mxu0 0
      %911 = vmatpush1.bf16.msra.mxu0 0
      %912 = vmatprep.subr.bf16.mxu0 0
      %913 = vmatpush1.bf16.msra.mxu0 0
      %914 = vmatprep.mubr.bf16.mxu0 0
      %915 = vmatmul.mubr.bf16.gmra.mrb[0].mxu0 %v880
      %v916 = vpop.f32.mrb[0].mxu0
      %v917 = vadd.f32 %v862, %v916
      %v918 = vpop.f32.mrb[0].mxu0
      %v919 = vpop.f32.mrb[0].mxu0
      %v920 = vpop.f32.mrb[0].mxu0
      %921 = vdwg.mxu0
      %922 = vst [vmem:[#allocation5] sm:$0xff] %v917
    $region33: #{tpu_custom_call.1} parent=1 // pred_fallthru
      _
    // Predicated region
    $region34: #{tpu_custom_call.1} parent=1 // pred_check
      _
    $region35: #{tpu_custom_call.1} parent=1 // pred_check_branch
      %924 = sbr.rel (0) target = $region37
    $region36: #{tpu_custom_call.1} parent=1 // pred_region
      %s926 = ssub.s32 128, 128
      %927 = vsyncadd [#allocation6], %s926
      %s929 = sshll.u32 [#allocation5], 4
      %s930 = int_to_ptr.vmem [resolvable:$true] %s929
      %932 = dma.vmem_to_hbm [thread:$0]  %s930, 128, %s6, [#allocation6]
    $region37: #{tpu_custom_call.1} parent=1 // pred_fallthru
      _
    // Predicated region
    $region38: #{tpu_custom_call.1} parent=1 // pred_check
      _
    $region39: #{tpu_custom_call.1} parent=1 // pred_check_branch
      %934 = sbr.rel (0) target = $region41
    $region40: #{tpu_custom_call.1} parent=1 // pred_region
      %935 = dma.done [#allocation6], 128
    $region41: #{tpu_custom_call.1} parent=1 // pred_fallthru
      _
    %936 = vsyncpa [#allocation6], 1

</llo_original>
